<compile_context>
chip_gen: v7x
topology: tpu7x:2x2x1
jax: 0.10.0
libtpu: 0.0.40
codegen_flags: <defaults>
</compile_context>

<pallas_src>
import jax
import jax.numpy as jnp
from jax.experimental import pallas as pl
from jax.experimental.pallas import tpu as pltpu


# ---------------------------------------------------------------------------
# Tile selection (byte-based, dtype-aware, generation-aware)
# ---------------------------------------------------------------------------
def _sublane_pack(dtype) -> int:
    # Rows per vreg sublane group: 8 for 4-byte, 16 for 2-byte, 32 for 1-byte dtypes.
    return max(8, 32 // jnp.dtype(dtype).itemsize)


def _tile_byte_budget() -> int:
    # Per x/out block byte budget. Double-buffered in+out => ~4x this live.
    # v7x has only 64 MiB VMEM -> default 6 MiB tiles (~24 MiB live).
    # v5e/v6e (128 MiB VMEM) can afford larger tiles -> 12 MiB (~48 MiB live).
    try:
        info = pltpu.get_tpu_info()
        vmem = getattr(info, "vmem_capacity_bytes", None)
        if vmem is not None and vmem >= 96 * 1024 * 1024:
            return 12 * 1024 * 1024
    except Exception:
        pass
    return 6 * 1024 * 1024


def _choose_tiles(R: int, L: int, dtype):
    itemsize = jnp.dtype(dtype).itemsize
    pack = _sublane_pack(dtype)
    max_elems = max(_tile_byte_budget() // itemsize, pack * 128)

    if L <= max_elems:
        # Full-L lane tiles: each block is one fully contiguous HBM slab over
        # consecutive (n, c) rows; no ragged / masked lane tail.
        TL = L
        max_r = max(1, max_elems // L)
        TR = R if R <= max_r else max(pack, (max_r // pack) * pack)
    else:
        # Enormous spatial extent: split the lane axis on a multiple of 128,
        # preferring one that divides L so tail stores stay unmasked.
        TL = (max_elems // 128) * 128
        for cand in range(TL, 127, -128):
            if L % cand == 0:
                TL = cand
                break
        max_r = max(1, max_elems // TL)
        TR = R if R <= max_r else max(pack, (max_r // pack) * pack)
    return TR, TL


# ---------------------------------------------------------------------------
# Kernel: out = relu(x - b) - relu(-x - b), bias broadcast per row (channel)
# ---------------------------------------------------------------------------
def _drelu_kernel(x_ref, b_ref, o_ref):
    x = x_ref[...]            # (TR, TL)
    b = b_ref[...]            # (TR, 1) -> broadcasts along the lane axis
    o_ref[...] = jnp.maximum(x - b, 0.0) - jnp.maximum(-x - b, 0.0)


# ---------------------------------------------------------------------------
# Wrapper matching DReLU.forward(x, filters, alpha)
# ---------------------------------------------------------------------------
def drelu_forward(x: jax.Array, filters: jax.Array, alpha: float = 8.0 / 255) -> jax.Array:
    N, C, H, W = x.shape
    assert filters.shape[0] == C, "filters dim 0 must match x channel dim"
    L = H * W
    R = N * C

    # Per-channel bias (tiny reduction; summed in the filters' dtype, as PyTorch does).
    bias_c = alpha * jnp.sum(jnp.abs(filters), axis=(1, 2, 3))           # (C,)
    bias_rows = jnp.broadcast_to(bias_c.astype(x.dtype)[None, :], (N, C))
    bias_rows = bias_rows.reshape(R, 1)                                   # (N*C, 1)

    x2 = x.reshape(R, L)                                                  # contiguous reshape

    TR, TL = _choose_tiles(R, L, x.dtype)
    grid = (pl.cdiv(R, TR), pl.cdiv(L, TL))

    tile_bytes = TR * TL * jnp.dtype(x.dtype).itemsize
    vmem_limit = int(min(max(4 * tile_bytes + (2 << 20), 16 << 20), 100 << 20))

    out2 = pl.pallas_call(
        _drelu_kernel,
        out_shape=jax.ShapeDtypeStruct((R, L), x.dtype),
        grid=grid,
        in_specs=[
            pl.BlockSpec((TR, TL), lambda r, l: (r, l)),
            # Bias block index is constant across the (innermost) lane axis,
            # so its re-DMA is elided on the hot loop.
            pl.BlockSpec((TR, 1), lambda r, l: (r, 0)),
        ],
        out_specs=pl.BlockSpec((TR, TL), lambda r, l: (r, l)),
        compiler_params=pltpu.CompilerParams(
            dimension_semantics=("parallel", "parallel"),
            vmem_limit_bytes=vmem_limit,
        ),
    )(x2, bias_rows)

    return out2.reshape(N, C, H, W)


# ---------------------------------------------------------------------------
# Pure-JAX reference (mirrors the PyTorch module exactly)
# ---------------------------------------------------------------------------
def drelu_reference(x, filters, alpha=8.0 / 255):
    bias = alpha * jnp.sum(jnp.abs(filters), axis=(1, 2, 3))[None, :, None, None]
    return jax.nn.relu(x - bias) - jax.nn.relu(-x - bias)


if __name__ == "__main__":
    key = jax.random.PRNGKey(0)
    kx, kf = jax.random.split(key)

    # small shapes: batch=2, channels=4, spatial=16x16; filters (C_out=4, C_in=3, 3, 3)
    x = jax.random.normal(kx, (2, 4, 16, 16), dtype=jnp.float32)
    filters = jax.random.normal(kf, (4, 3, 3, 3), dtype=jnp.float32) * 0.1

    out = jax.block_until_ready(drelu_forward(x, filters))

    ref = drelu_reference(x, filters)
    assert out.shape == ref.shape and out.dtype == ref.dtype
    assert jnp.allclose(out, ref, atol=1e-6, rtol=1e-6), "mismatch vs reference"

    print("KERNEL_OK")
</pallas_src>

<mosaic_0001>
module attributes {stable_mosaic.version = 11 : i64} {
  func.func @_drelu_kernel(%arg0: i32, %arg1: i32, %arg2: memref<8x256xf32, #tpu.memory_space<vmem>>, %arg3: memref<8x1xf32, #tpu.memory_space<vmem>>, %arg4: memref<8x256xf32, #tpu.memory_space<vmem>>) attributes {dimension_semantics = [#tpu.dimension_semantics<parallel>, #tpu.dimension_semantics<parallel>], iteration_bounds = array<i64: 1, 1>, scalar_prefetch = 0 : i64, scratch_operands = 0 : i64, tpu.core_type = #tpu.core_type<tc>, window_params = [{transform_indices = @transform_0, window_bounds = array<i64: 8, 256>}, {transform_indices = @transform_1, window_bounds = array<i64: 8, 1>}, {transform_indices = @transform_2, window_bounds = array<i64: 8, 256>}]} {
    %c0 = arith.constant 0 : index
    %c0_0 = arith.constant 0 : index
    %0 = vector.load %arg2[%c0, %c0_0] : memref<8x256xf32, #tpu.memory_space<vmem>>, vector<8x256xf32>
    %c0_1 = arith.constant 0 : index
    %c0_2 = arith.constant 0 : index
    %1 = vector.load %arg3[%c0_1, %c0_2] : memref<8x1xf32, #tpu.memory_space<vmem>>, vector<8x1xf32>
    %2 = vector.broadcast %1 : vector<8x1xf32> to vector<8x256xf32>
    %3 = arith.subf %0, %2 : vector<8x256xf32>
    %cst = arith.constant 0.000000e+00 : f32
    %4 = vector.broadcast %cst : f32 to vector<8x256xf32>
    %5 = arith.maximumf %3, %4 : vector<8x256xf32>
    %cst_3 = arith.constant 0.000000e+00 : f32
    %6 = vector.broadcast %cst_3 : f32 to vector<8x256xf32>
    %7 = arith.subf %6, %0 : vector<8x256xf32>
    %8 = vector.broadcast %1 : vector<8x1xf32> to vector<8x256xf32>
    %9 = arith.subf %7, %8 : vector<8x256xf32>
    %cst_4 = arith.constant 0.000000e+00 : f32
    %10 = vector.broadcast %cst_4 : f32 to vector<8x256xf32>
    %11 = arith.maximumf %9, %10 : vector<8x256xf32>
    %12 = arith.subf %5, %11 : vector<8x256xf32>
    %c0_5 = arith.constant 0 : index
    %c0_6 = arith.constant 0 : index
    %13 = vector.load %arg4[%c0_5, %c0_6] : memref<8x256xf32, #tpu.memory_space<vmem>>, vector<8x256xf32>
    tpu.vector_store %arg4[%c0_5, %c0_6], %12 {strides = array<i32>} : memref<8x256xf32, #tpu.memory_space<vmem>>, vector<8x256xf32>,
    return
  }
  func.func @transform_0(%arg0: i32, %arg1: i32) -> (i32, i32) {
    %c0_i32 = arith.constant 0 : i32
    return %arg0, %arg1 : i32, i32
  }
  func.func @transform_1(%arg0: i32, %arg1: i32) -> (i32, i32) {
    %c0_i32 = arith.constant 0 : i32
    %c0_i32_0 = arith.constant 0 : i32
    return %arg0, %c0_i32 : i32, i32
  }
  func.func @transform_2(%arg0: i32, %arg1: i32) -> (i32, i32) {
    %c0_i32 = arith.constant 0 : i32
    return %arg0, %arg1 : i32, i32
  }
}

</mosaic_0001>

<llo_original>
// kernel: tpu_custom_call.1
$region0: #{tpu_custom_call.1}
  #allocation0 [shape = 'u32[]', space=smem, size = 0x4, offset = 0x4, fixed_abs, tag = 'smem constant byte address 0x4 - core index']
  #allocation1 [shape = 'u32[144,128]{1,0:T(1,128)}', space=vmem, size = 0x12000, scoped, tag = 'internal scratch']
  %s0 = inlined_call_operand.hbm [shape: f32[8,256], index: 0, kind: input, shape index: {}]
  %s1 = inlined_call_operand.vmem [shape: f32[8,1], index: 1, kind: input, shape index: {}]
  %s2 = inlined_call_operand.hbm [shape: f32[8,256], index: 2, kind: output, shape index: {}]
  %s3 = sld [smem:[#allocation0]]
  $region22: #{tpu_custom_call.1} parent=0
    _
  %s5 = ssub.s32 1, %s3
  %s6 = scalar_select 0, %s5, %s3
  $region1: #{tpu_custom_call.1} parent=0
    #allocation2 [shape = 'u8[8192]{0}', space=vmem, size = 0x2000, scoped, tag = 'input window, operand 0, single buffered']
    #allocation3 [shape = 's32[1]{0}', space=sflag, size = 0x4, scoped, tag = 'scoped memory for tpu_custom_call.1']
    #allocation4 [shape = 's32[1]{0}', space=sflag, size = 0x4, scoped, tag = 'scoped memory for tpu_custom_call.1']
    #allocation5 [shape = 'u8[8192]{0}', space=vmem, size = 0x2000, scoped, tag = 'output window, operand 0, single buffered']
    %7 = vsyncpa [#allocation3], 0
    %8 = vsyncpa [#allocation4], 0
    // Predicated region
    $region2: #{tpu_custom_call.1} parent=1 // pred_check
      _
    $region3: #{tpu_custom_call.1} parent=1 // pred_check_branch
      %10 = sbr.rel (0) target = $region5
    $region4: #{tpu_custom_call.1} parent=1 // pred_region
      %s12 = ssub.s32 256, 256
      %13 = vsyncadd [#allocation3], %s12
      %s15 = sshll.u32 [#allocation2], 4
      %s16 = int_to_ptr.vmem [resolvable:$true] %s15
      %18 = dma.hbm_to_vmem [thread:$0]  %s0, 256, %s16, [#allocation3]
    $region5: #{tpu_custom_call.1} parent=1 // pred_fallthru
      _
    // Predicated region
    $region6: #{tpu_custom_call.1} parent=1 // pred_check
      _
    $region7: #{tpu_custom_call.1} parent=1 // pred_check_branch
      %20 = sbr.rel (0) target = $region9
    $region8: #{tpu_custom_call.1} parent=1 // pred_region
      _
    $region9: #{tpu_custom_call.1} parent=1 // pred_fallthru
      _
    // Predicated region
    $region10: #{tpu_custom_call.1} parent=1 // pred_check
      _
    $region11: #{tpu_custom_call.1} parent=1 // pred_check_branch
      %22 = sbr.rel (0) target = $region13
    $region12: #{tpu_custom_call.1} parent=1 // pred_region
      %23 = dma.done [#allocation3], 256
    $region13: #{tpu_custom_call.1} parent=1 // pred_fallthru
      _
    %v24 = vld [vmem:[#allocation2] sm:$0xff]
    %v25 = vld [vmem:[#allocation2 + $0x8] sm:$0xff]
    %v26 = vld [vmem:[%s1] sm:$0xff]
    %28 = vset.pattern.permute.xlu0 0
    %29 = vperm.xlu0 %28, %v26
    %v30 = vpop.permute.xlu0 %29
    %v32 = vsub.f32 %v24, %v30
    %v33 = vsub.f32 %v25, %v30
    %v34 = vmax.f32 %v32, 0.0
    %v35 = vmax.f32 %v33, 0.0
    %v36 = vsub.f32 0.0, %v24
    %v37 = vsub.f32 0.0, %v25
    %v38 = vsub.f32 %v36, %v30
    %v39 = vsub.f32 %v37, %v30
    %v40 = vmax.f32 %v38, 0.0
    %v41 = vmax.f32 %v39, 0.0
    %v42 = vsub.f32 %v34, %v40
    %v43 = vsub.f32 %v35, %v41
    %44 = vst [vmem:[#allocation5] sm:$0xff] %v42
    %45 = vst [vmem:[#allocation5 + $0x8] sm:$0xff] %v43
    // Predicated region
    $region14: #{tpu_custom_call.1} parent=1 // pred_check
      _
    $region15: #{tpu_custom_call.1} parent=1 // pred_check_branch
      %47 = sbr.rel (0) target = $region17
    $region16: #{tpu_custom_call.1} parent=1 // pred_region
      %s49 = ssub.s32 256, 256
      %50 = vsyncadd [#allocation4], %s49
      %s52 = sshll.u32 [#allocation5], 4
      %s53 = int_to_ptr.vmem [resolvable:$true] %s52
      %55 = dma.vmem_to_hbm [thread:$0]  %s53, 256, %s2, [#allocation4]
    $region17: #{tpu_custom_call.1} parent=1 // pred_fallthru
      _
    // Predicated region
    $region18: #{tpu_custom_call.1} parent=1 // pred_check
      _
    $region19: #{tpu_custom_call.1} parent=1 // pred_check_branch
      %57 = sbr.rel (0) target = $region21
    $region20: #{tpu_custom_call.1} parent=1 // pred_region
      %58 = dma.done [#allocation4], 256
    $region21: #{tpu_custom_call.1} parent=1 // pred_fallthru
      _
    %59 = vsyncpa [#allocation3], 1
    %60 = vsyncpa [#allocation4], 1

</llo_original>
